<compile_context>
chip_gen: v6e
topology: v6e:2x2x1
jax: 0.10.0
libtpu: 0.0.40
codegen_flags: <defaults>
</compile_context>

<pallas_src>
import functools

import jax
import jax.numpy as jnp
from jax import lax
from jax.experimental import pallas as pl
from jax.experimental.pallas import tpu as pltpu

LANE = 128


def _round_up(a: int, b: int) -> int:
    return ((a + b - 1) // b) * b


def _default_bf16_epilogue() -> bool:
    """bf16 gelu/epilogue only on generations with a bf16 VPU/EUP datapath."""
    try:
        kind = jax.devices()[0].device_kind.lower()
    except Exception:
        return False
    return ("v6" in kind) or ("v7" in kind) or ("7x" in kind)


def _residual_mlp_kernel(x_ref, w1_ref, b1_ref, w2_ref, b2_ref, o_ref, *,
                         sub_rows, bf16_matmul, bf16_epilogue):
    tm = x_ref.shape[0]
    n_sub = tm // sub_rows

    mxu_dt = jnp.bfloat16 if bf16_matmul else x_ref.dtype
    epi_dt = jnp.bfloat16 if bf16_epilogue else jnp.float32

    def body(c, carry):
        r0 = pl.multiple_of(c * sub_rows, sub_rows)
        # f32 residual copy of this sub-chunk (lane-dense: last dim is 128-wide
        # after packing in the wrapper).
        x = x_ref[pl.ds(r0, sub_rows), :]

        # First matmul: bf16 operands, f32 accumulation on the MXU.
        h = jnp.dot(x.astype(mxu_dt), w1_ref[...].astype(mxu_dt),
                    preferred_element_type=jnp.float32)
        # Bias + GELU in the epilogue dtype (bf16 on v6e/v7x, f32 on v5e).
        h = (h + b1_ref[...]).astype(epi_dt)
        # TODO(synk): PyTorch nn.GELU defaults to exact erf; tanh-approx GELU used here.
        h = jax.nn.gelu(h, approximate=True)

        # Second matmul, then bias + residual + store in f32.
        y = jnp.dot(h.astype(mxu_dt), w2_ref[...].astype(mxu_dt),
                    preferred_element_type=jnp.float32)
        y = y + b2_ref[...]
        o_ref[pl.ds(r0, sub_rows), :] = (x + y).astype(o_ref.dtype)
        return carry

    # Small unroll (not full) keeps live vregs bounded at large tiles while
    # still giving the LLO scheduler some visibility.
    unroll = True if n_sub <= 4 else 4
    lax.fori_loop(0, n_sub, body, 0, unroll=unroll)


def residual_add_mlp(x2d, w1, b1, w2, b2, *, max_rows_per_step=2048,
                     sub_rows=32, bf16_matmul=True, bf16_epilogue=None):
    """x2d: [N, D] f32. Returns x2d + gelu(x2d @ w1 + b1) @ w2 + b2."""
    if bf16_epilogue is None:
        bf16_epilogue = _default_bf16_epilogue()

    N, D = x2d.shape
    H = w1.shape[1]
    dtype = x2d.dtype
    b1 = b1.reshape(1, H)
    b2 = b2.reshape(1, D)

    # ---- Lane-dense packing: fold `pack` consecutive rows into one 128-lane row.
    pack = LANE // D if (D < LANE and LANE % D == 0) else 1
    N_pack = _round_up(N, pack)
    if N_pack != N:                       # pad a handful of zero rows (sliced off later)
        x2d = jnp.pad(x2d, ((0, N_pack - N), (0, 0)))
    Np_raw, Dp, Hp = N_pack // pack, D * pack, H * pack
    xp = x2d.reshape(Np_raw, Dp)          # contiguous, zero-cost

    if pack > 1:
        eye = jnp.eye(pack, dtype=w1.dtype)
        w1p = jnp.kron(eye, w1)           # [Dp, Hp] block-diagonal
        w2p = jnp.kron(eye, w2)           # [Hp, Dp] block-diagonal
        b1p = jnp.tile(b1, (1, pack))     # [1, Hp]
        b2p = jnp.tile(b2, (1, pack))     # [1, Dp]
    else:
        w1p, w2p, b1p, b2p = w1, w2, b1, b2

    if bf16_matmul:
        w1p = w1p.astype(jnp.bfloat16)
        w2p = w2p.astype(jnp.bfloat16)

    # ---- Row-tile selection.
    # Keep the per-step f32 tile around ~1 MiB even if Dp grows beyond 128.
    cap = (max_rows_per_step * LANE) // max(Dp, LANE)
    cap = max(sub_rows, cap - cap % sub_rows)
    if Np_raw <= sub_rows:
        n_steps = 1
        tm = _round_up(max(Np_raw, 8), 8)
        sub = tm
    else:
        # >= 2 grid steps once there is enough work, so v7x's 2 TCs both run.
        n_steps = max(2, -(-Np_raw // cap))
        tm = _round_up(-(-Np_raw // n_steps), sub_rows)
        sub = sub_rows
    Np = n_steps * tm
    if Np != Np_raw:                      # pad packed rows up to a multiple of tm
        xp = jnp.pad(xp, ((0, Np - Np_raw), (0, 0)))

    kernel = functools.partial(_residual_mlp_kernel, sub_rows=sub,
                               bf16_matmul=bf16_matmul,
                               bf16_epilogue=bf16_epilogue)

    wbytes = 2 if bf16_matmul else 4
    cost = pl.CostEstimate(
        flops=4 * Np * Dp * Hp,                       # actual (block-diagonal) MXU work
        transcendentals=Np * Hp,                      # gelu
        bytes_accessed=2 * Np * Dp * 4                # x read + out write (f32)
                       + 2 * Dp * Hp * wbytes         # W1 + W2
                       + (Hp + Dp) * 4,               # biases
    )

    out_p = pl.pallas_call(
        kernel,
        out_shape=jax.ShapeDtypeStruct((Np, Dp), dtype),
        grid_spec=pltpu.PrefetchScalarGridSpec(
            num_scalar_prefetch=0,
            grid=(Np // tm,),
            in_specs=[
                pl.BlockSpec((tm, Dp), lambda i: (i, 0)),   # x rows (lane-dense)
                pl.BlockSpec((Dp, Hp), lambda i: (0, 0)),   # W1 (resident)
                pl.BlockSpec((1, Hp), lambda i: (0, 0)),    # b1
                pl.BlockSpec((Hp, Dp), lambda i: (0, 0)),   # W2 (resident)
                pl.BlockSpec((1, Dp), lambda i: (0, 0)),    # b2
            ],
            out_specs=pl.BlockSpec((tm, Dp), lambda i: (i, 0)),
        ),
        compiler_params=pltpu.CompilerParams(
            dimension_semantics=("parallel",)),
        cost_estimate=cost,
    )(xp, w1p, b1p, w2p, b2p)

    out = out_p[:Np_raw].reshape(N_pack, D)
    return out[:N]


def residual_add_mlp_ref(x, w1, b1, w2, b2, *, bf16_matmul=True, bf16_epilogue=False):
    """Reference mirroring the kernel's dtype policy."""
    mxu_dt = jnp.bfloat16 if bf16_matmul else x.dtype
    epi_dt = jnp.bfloat16 if bf16_epilogue else jnp.float32
    h = jnp.dot(x.astype(mxu_dt), w1.astype(mxu_dt),
                preferred_element_type=jnp.float32) + b1.reshape(1, -1)
    h = jax.nn.gelu(h.astype(epi_dt), approximate=True)
    y = jnp.dot(h.astype(mxu_dt), w2.astype(mxu_dt),
                preferred_element_type=jnp.float32) + b2.reshape(1, -1)
    return x + y


if __name__ == "__main__":
    # Small shapes consistent with the module: batch=2, seq=8, hidden=32,
    # MLP expansion 2x -> H=64.
    batch, seq, D, H = 2, 8, 32, 64
    N = batch * seq

    key = jax.random.PRNGKey(0)
    kx, k1, kb1, k2, kb2 = jax.random.split(key, 5)

    x = jax.random.normal(kx, (batch, seq, D), dtype=jnp.float32)

    # Deterministic parameter init (synthetic; no checkpoint load).
    w1 = jax.random.normal(k1, (D, H), dtype=jnp.float32) * (1.0 / jnp.sqrt(D))
    b1 = jax.random.normal(kb1, (H,), dtype=jnp.float32) * 0.1
    w2 = jax.random.normal(k2, (H, D), dtype=jnp.float32) * (1.0 / jnp.sqrt(H))
    b2 = jax.random.normal(kb2, (D,), dtype=jnp.float32) * 0.1

    bf16_epi = _default_bf16_epilogue()

    x2d = x.reshape(N, D)
    out = residual_add_mlp(x2d, w1, b1, w2, b2, bf16_epilogue=bf16_epi)
    out = jax.block_until_ready(out)

    ref_matched = residual_add_mlp_ref(x2d, w1, b1, w2, b2,
                                       bf16_matmul=True, bf16_epilogue=bf16_epi)
    ref_f32 = residual_add_mlp_ref(x2d, w1, b1, w2, b2,
                                   bf16_matmul=False, bf16_epilogue=False)
    assert out.shape == (N, D)
    assert jnp.allclose(out, ref_matched, atol=2e-2, rtol=2e-2), \
        "mismatch vs dtype-matched reference"
    assert jnp.allclose(out, ref_f32, atol=7e-2, rtol=7e-2), \
        "mismatch vs full-f32 reference"

    out = out.reshape(batch, seq, D)
    print("KERNEL_OK")
</pallas_src>

<mosaic_0001>
module attributes {stable_mosaic.version = 11 : i64} {
  func.func @_residual_mlp_kernel(%arg0: i32, %arg1: memref<8x128xf32, #tpu.memory_space<vmem>>, %arg2: memref<128x256xbf16, #tpu.memory_space<vmem>>, %arg3: memref<1x256xf32, #tpu.memory_space<vmem>>, %arg4: memref<256x128xbf16, #tpu.memory_space<vmem>>, %arg5: memref<1x128xf32, #tpu.memory_space<vmem>>, %arg6: memref<8x128xf32, #tpu.memory_space<vmem>>) attributes {dimension_semantics = [#tpu.dimension_semantics<parallel>], iteration_bounds = array<i64: 1>, scalar_prefetch = 0 : i64, scratch_operands = 0 : i64, tpu.core_type = #tpu.core_type<tc>, window_params = [{transform_indices = @transform_0, window_bounds = array<i64: 8, 128>}, {pipeline_mode = #tpu.pipeline_mode<synchronous>, transform_indices = @transform_1, window_bounds = array<i64: 128, 256>}, {pipeline_mode = #tpu.pipeline_mode<synchronous>, transform_indices = @transform_2, window_bounds = array<i64: 1, 256>}, {pipeline_mode = #tpu.pipeline_mode<synchronous>, transform_indices = @transform_3, window_bounds = array<i64: 256, 128>}, {pipeline_mode = #tpu.pipeline_mode<synchronous>, transform_indices = @transform_4, window_bounds = array<i64: 1, 128>}, {transform_indices = @transform_5, window_bounds = array<i64: 8, 128>}]} {
    %c0_i32 = arith.constant 0 : i32
    %c8_i32 = arith.constant 8 : i32
    %0 = arith.muli %c0_i32, %c8_i32 : i32
    %1 = tpu.assume_multiple %0, 8 : i32
    %2 = arith.index_cast %1 : i32 to index
    %c0 = arith.constant 0 : index
    %3 = vector.load %arg1[%2, %c0] : memref<8x128xf32, #tpu.memory_space<vmem>>, vector<8x128xf32>
    %4 = arith.truncf %3 : vector<8x128xf32> to vector<8x128xbf16>
    %c0_0 = arith.constant 0 : index
    %c0_1 = arith.constant 0 : index
    %5 = vector.load %arg2[%c0_0, %c0_1] : memref<128x256xbf16, #tpu.memory_space<vmem>>, vector<128x256xbf16>
    %cst = arith.constant dense<0.000000e+00> : vector<8x256xf32>
    %6 = tpu.matmul %4, %5, %cst {dimension_numbers = #tpu.dot_dimension_numbers<[1], [0], [0], [1], [0, 0, 1, 1], [], []>} : vector<8x128xbf16>, vector<128x256xbf16>, vector<8x256xf32> -> vector<8x256xf32>
    %c0_2 = arith.constant 0 : index
    %c0_3 = arith.constant 0 : index
    %7 = vector.load %arg3[%c0_2, %c0_3] : memref<1x256xf32, #tpu.memory_space<vmem>>, vector<1x256xf32>
    %8 = vector.broadcast %7 : vector<1x256xf32> to vector<8x256xf32>
    %9 = arith.addf %6, %8 : vector<8x256xf32>
    %10 = arith.mulf %9, %9 : vector<8x256xf32>
    %11 = arith.mulf %9, %10 : vector<8x256xf32>
    %cst_4 = arith.constant 4.471500e-02 : f32
    %12 = vector.broadcast %cst_4 : f32 to vector<8x256xf32>
    %13 = arith.mulf %12, %11 : vector<8x256xf32>
    %14 = arith.addf %9, %13 : vector<8x256xf32>
    %cst_5 = arith.constant 0.797884583 : f32
    %15 = vector.broadcast %cst_5 : f32 to vector<8x256xf32>
    %16 = arith.mulf %15, %14 : vector<8x256xf32>
    %17 = math.tanh %16 : vector<8x256xf32>
    %cst_6 = arith.constant 1.000000e+00 : f32
    %18 = vector.broadcast %cst_6 : f32 to vector<8x256xf32>
    %19 = arith.addf %18, %17 : vector<8x256xf32>
    %cst_7 = arith.constant 5.000000e-01 : f32
    %20 = vector.broadcast %cst_7 : f32 to vector<8x256xf32>
    %21 = arith.mulf %20, %19 : vector<8x256xf32>
    %22 = arith.mulf %9, %21 : vector<8x256xf32>
    %23 = arith.truncf %22 : vector<8x256xf32> to vector<8x256xbf16>
    %c0_8 = arith.constant 0 : index
    %c0_9 = arith.constant 0 : index
    %24 = vector.load %arg4[%c0_8, %c0_9] : memref<256x128xbf16, #tpu.memory_space<vmem>>, vector<256x128xbf16>
    %cst_10 = arith.constant dense<0.000000e+00> : vector<8x128xf32>
    %25 = tpu.matmul %23, %24, %cst_10 {dimension_numbers = #tpu.dot_dimension_numbers<[1], [0], [0], [1], [0, 0, 1, 1], [], []>} : vector<8x256xbf16>, vector<256x128xbf16>, vector<8x128xf32> -> vector<8x128xf32>
    %c0_11 = arith.constant 0 : index
    %c0_12 = arith.constant 0 : index
    %26 = vector.load %arg5[%c0_11, %c0_12] : memref<1x128xf32, #tpu.memory_space<vmem>>, vector<1x128xf32>
    %27 = vector.broadcast %26 : vector<1x128xf32> to vector<8x128xf32>
    %28 = arith.addf %25, %27 : vector<8x128xf32>
    %29 = arith.addf %3, %28 : vector<8x128xf32>
    %30 = arith.index_cast %1 : i32 to index
    %c0_13 = arith.constant 0 : index
    %31 = vector.load %arg6[%30, %c0_13] : memref<8x128xf32, #tpu.memory_space<vmem>>, vector<8x128xf32>
    tpu.vector_store %arg6[%30, %c0_13], %29 {strides = array<i32>} : memref<8x128xf32, #tpu.memory_space<vmem>>, vector<8x128xf32>,
    %c1_i32 = arith.constant 1 : i32
    return
  }
  func.func @transform_0(%arg0: i32) -> (i32, i32) {
    %c0_i32 = arith.constant 0 : i32
    %c0_i32_0 = arith.constant 0 : i32
    return %arg0, %c0_i32 : i32, i32
  }
  func.func @transform_1(%arg0: i32) -> (i32, i32) {
    %c0_i32 = arith.constant 0 : i32
    %c0_i32_0 = arith.constant 0 : i32
    %c0_i32_1 = arith.constant 0 : i32
    return %c0_i32, %c0_i32_0 : i32, i32
  }
  func.func @transform_2(%arg0: i32) -> (i32, i32) {
    %c0_i32 = arith.constant 0 : i32
    %c0_i32_0 = arith.constant 0 : i32
    %c0_i32_1 = arith.constant 0 : i32
    return %c0_i32, %c0_i32_0 : i32, i32
  }
  func.func @transform_3(%arg0: i32) -> (i32, i32) {
    %c0_i32 = arith.constant 0 : i32
    %c0_i32_0 = arith.constant 0 : i32
    %c0_i32_1 = arith.constant 0 : i32
    return %c0_i32, %c0_i32_0 : i32, i32
  }
  func.func @transform_4(%arg0: i32) -> (i32, i32) {
    %c0_i32 = arith.constant 0 : i32
    %c0_i32_0 = arith.constant 0 : i32
    %c0_i32_1 = arith.constant 0 : i32
    return %c0_i32, %c0_i32_0 : i32, i32
  }
  func.func @transform_5(%arg0: i32) -> (i32, i32) {
    %c0_i32 = arith.constant 0 : i32
    %c0_i32_0 = arith.constant 0 : i32
    return %arg0, %c0_i32 : i32, i32
  }
}

</mosaic_0001>

<llo_original>
// kernel: tpu_custom_call.1
$region0: #{tpu_custom_call.1}
  #allocation0 [shape = 'u32[]', space=smem, size = 0x4, offset = 0x4, fixed_abs, tag = 'smem constant byte address 0x4 - core index']
  #allocation1 [shape = 'u32[144,128]{1,0:T(1,128)}', space=vmem, size = 0x12000, scoped, tag = 'internal scratch']
  %s0 = inlined_call_operand.hbm [shape: f32[8,128], index: 0, kind: input, shape index: {}]
  %s1 = inlined_call_operand.hbm [shape: bf16[128,256], index: 1, kind: input, shape index: {}]
  %s2 = inlined_call_operand.vmem [shape: f32[1,256], index: 2, kind: input, shape index: {}]
  %s3 = inlined_call_operand.hbm [shape: bf16[256,128], index: 3, kind: input, shape index: {}]
  %s4 = inlined_call_operand.vmem [shape: f32[1,128], index: 4, kind: input, shape index: {}]
  %s5 = inlined_call_operand.hbm [shape: f32[8,128], index: 5, kind: output, shape index: {}]
  %s6 = sld [smem:[#allocation0]]
  $region42: #{tpu_custom_call.1} parent=0
    _
  %s8 = ssub.s32 1, %s6
  %s9 = scalar_select 0, %s8, %s6
  $region1: #{tpu_custom_call.1} parent=0
    #allocation2 [shape = 'u8[4096]{0}', space=vmem, size = 0x1000, scoped, tag = 'input window, operand 0, single buffered']
    #allocation3 [shape = 's32[1]{0}', space=sflag, size = 0x4, scoped, tag = 'scoped memory for tpu_custom_call.1']
    #allocation4 [shape = 's32[1]{0}', space=sflag, size = 0x4, scoped, tag = 'scoped memory for tpu_custom_call.1']
    #allocation5 [shape = 'u8[65536]{0}', space=vmem, size = 0x10000, scoped, tag = 'input window, operand 1, single buffered']
    #allocation6 [shape = 's32[1]{0}', space=sflag, size = 0x4, scoped, tag = 'scoped memory for tpu_custom_call.1']
    #allocation7 [shape = 'u8[65536]{0}', space=vmem, size = 0x10000, scoped, tag = 'input window, operand 3, single buffered']
    #allocation8 [shape = 'u8[4096]{0}', space=vmem, size = 0x1000, scoped, tag = 'output window, operand 0, single buffered']
    %10 = vsyncpa [#allocation3], 0
    %11 = vsyncpa [#allocation6], 0
    %12 = vsyncpa [#allocation4], 0
    // Predicated region
    $region2: #{tpu_custom_call.1} parent=1 // pred_check
      _
    $region3: #{tpu_custom_call.1} parent=1 // pred_check_branch
      %14 = sbr.rel (0) target = $region5
    $region4: #{tpu_custom_call.1} parent=1 // pred_region
      %s16 = ssub.s32 128, 128
      %17 = vsyncadd [#allocation3], %s16
      %s19 = sshll.u32 [#allocation2], 4
      %s20 = int_to_ptr.vmem [resolvable:$true] %s19
      %22 = dma.hbm_to_vmem [thread:$0]  %s0, 128, %s20, [#allocation3]
    $region5: #{tpu_custom_call.1} parent=1 // pred_fallthru
      _
    // Predicated region
    $region6: #{tpu_custom_call.1} parent=1 // pred_check
      _
    $region7: #{tpu_custom_call.1} parent=1 // pred_check_branch
      %24 = sbr.rel (0) target = $region9
    $region8: #{tpu_custom_call.1} parent=1 // pred_region
      %s26 = ssub.s32 2048, 2048
      %27 = vsyncadd [#allocation6], %s26
      %s28 = sshll.u32 [#allocation5], 4
      %s29 = int_to_ptr.vmem [resolvable:$true] %s28
      %34 = dma.hbm_to_vmem [thread:$0]  %s1, 2048, %s29, [#allocation6], 128, 128, 8
    $region9: #{tpu_custom_call.1} parent=1 // pred_fallthru
      _
    // Predicated region
    $region10: #{tpu_custom_call.1} parent=1 // pred_check
      _
    $region11: #{tpu_custom_call.1} parent=1 // pred_check_branch
      %36 = sbr.rel (0) target = $region13
    $region12: #{tpu_custom_call.1} parent=1 // pred_region
      _
    $region13: #{tpu_custom_call.1} parent=1 // pred_fallthru
      _
    // Predicated region
    $region14: #{tpu_custom_call.1} parent=1 // pred_check
      _
    $region15: #{tpu_custom_call.1} parent=1 // pred_check_branch
      %38 = sbr.rel (0) target = $region17
    $region16: #{tpu_custom_call.1} parent=1 // pred_region
      %s40 = ssub.s32 2048, 2048
      %41 = vsyncadd [#allocation6], %s40
      %s42 = sshll.u32 [#allocation7], 4
      %s43 = int_to_ptr.vmem [resolvable:$true] %s42
      %48 = dma.hbm_to_vmem [thread:$0]  %s3, 2048, %s43, [#allocation6], 64, 64, 4
    $region17: #{tpu_custom_call.1} parent=1 // pred_fallthru
      _
    // Predicated region
    $region18: #{tpu_custom_call.1} parent=1 // pred_check
      _
    $region19: #{tpu_custom_call.1} parent=1 // pred_check_branch
      %50 = sbr.rel (0) target = $region21
    $region20: #{tpu_custom_call.1} parent=1 // pred_region
      _
    $region21: #{tpu_custom_call.1} parent=1 // pred_fallthru
      _
    // Predicated region
    $region22: #{tpu_custom_call.1} parent=1 // pred_check
      _
    $region23: #{tpu_custom_call.1} parent=1 // pred_check_branch
      %52 = sbr.rel (0) target = $region25
    $region24: #{tpu_custom_call.1} parent=1 // pred_region
      %53 = dma.done [#allocation3], 128
    $region25: #{tpu_custom_call.1} parent=1 // pred_fallthru
      _
    // Predicated region
    $region26: #{tpu_custom_call.1} parent=1 // pred_check
      _
    $region27: #{tpu_custom_call.1} parent=1 // pred_check_branch
      %55 = sbr.rel (0) target = $region29
    $region28: #{tpu_custom_call.1} parent=1 // pred_region
      %56 = dma.done [#allocation6], 2048
    $region29: #{tpu_custom_call.1} parent=1 // pred_fallthru
      _
    // Predicated region
    $region30: #{tpu_custom_call.1} parent=1 // pred_check
      _
    $region31: #{tpu_custom_call.1} parent=1 // pred_check_branch
      %58 = sbr.rel (0) target = $region33
    $region32: #{tpu_custom_call.1} parent=1 // pred_region
      %59 = dma.done [#allocation6], 2048
    $region33: #{tpu_custom_call.1} parent=1 // pred_fallthru
      _
    %v61 = vld [vmem:[#allocation2] sm:$0xff]
    %v62 = vpack.c.bf16 %v61, %v61
    %v63 = vld [vmem:[#allocation5] sm:$0xff]
    %v64 = vld [vmem:[#allocation5 + $0x8] sm:$0xff]
    %v65 = vld [vmem:[#allocation5 + $0x10] sm:$0xff]
    %v66 = vld [vmem:[#allocation5 + $0x18] sm:$0xff]
    %v67 = vld [vmem:[#allocation5 + $0x20] sm:$0xff]
    %v68 = vld [vmem:[#allocation5 + $0x28] sm:$0xff]
    %v69 = vld [vmem:[#allocation5 + $0x30] sm:$0xff]
    %v70 = vld [vmem:[#allocation5 + $0x38] sm:$0xff]
    %v71 = vld [vmem:[#allocation5 + $0x40] sm:$0xff]
    %v72 = vld [vmem:[#allocation5 + $0x48] sm:$0xff]
    %v73 = vld [vmem:[#allocation5 + $0x50] sm:$0xff]
    %v74 = vld [vmem:[#allocation5 + $0x58] sm:$0xff]
    %v75 = vld [vmem:[#allocation5 + $0x60] sm:$0xff]
    %v76 = vld [vmem:[#allocation5 + $0x68] sm:$0xff]
    %v77 = vld [vmem:[#allocation5 + $0x70] sm:$0xff]
    %v78 = vld [vmem:[#allocation5 + $0x78] sm:$0xff]
    %v79 = vld [vmem:[%s2] sm:$0x3]
    %v81 = vlaneseq
    %v82 = vshrl.u32 %v81, 7
    %v83 = vsub.s32 0, %v82
    %v84 = vrot.slane %v79, %v83
    %v85 = vlaneseq
    %v86 = vshrl.u32 %v85, 7
    %v87 = vsub.s32 1, %v86
    %v88 = vrot.slane %v79, %v87
    %v107 = vunpack.c.l.b16 %v63
    %v108 = vunpack.c.h.b16 %v63
    %v109 = vunpack.c.l.b16 %v64
    %v110 = vunpack.c.h.b16 %v64
    %v111 = vunpack.c.l.b16 %v65
    %v112 = vunpack.c.h.b16 %v65
    %v113 = vunpack.c.l.b16 %v66
    %v114 = vunpack.c.h.b16 %v66
    %v115 = vunpack.c.l.b16 %v67
    %v116 = vunpack.c.h.b16 %v67
    %v117 = vunpack.c.l.b16 %v68
    %v118 = vunpack.c.h.b16 %v68
    %v119 = vunpack.c.l.b16 %v69
    %v120 = vunpack.c.h.b16 %v69
    %v121 = vunpack.c.l.b16 %v70
    %v122 = vunpack.c.h.b16 %v70
    %v123 = vunpack.c.l.b16 %v71
    %v124 = vunpack.c.h.b16 %v71
    %v125 = vunpack.c.l.b16 %v72
    %v126 = vunpack.c.h.b16 %v72
    %v127 = vunpack.c.l.b16 %v73
    %v128 = vunpack.c.h.b16 %v73
    %v129 = vunpack.c.l.b16 %v74
    %v130 = vunpack.c.h.b16 %v74
    %v131 = vunpack.c.l.b16 %v75
    %v132 = vunpack.c.h.b16 %v75
    %v133 = vunpack.c.l.b16 %v76
    %v134 = vunpack.c.h.b16 %v76
    %v135 = vunpack.c.l.b16 %v77
    %v136 = vunpack.c.h.b16 %v77
    %v137 = vunpack.c.l.b16 %v78
    %v138 = vunpack.c.h.b16 %v78
    %v139 = vpack.c.b16 %v109, %v107
    %v140 = vpack.c.b16 %v110, %v108
    %v141 = vpack.c.b16 %v113, %v111
    %v142 = vpack.c.b16 %v114, %v112
    %v143 = vpack.c.b16 %v117, %v115
    %v144 = vpack.c.b16 %v118, %v116
    %v145 = vpack.c.b16 %v121, %v119
    %v146 = vpack.c.b16 %v122, %v120
    %v147 = vpack.c.b16 %v125, %v123
    %v148 = vpack.c.b16 %v126, %v124
    %v149 = vpack.c.b16 %v129, %v127
    %v150 = vpack.c.b16 %v130, %v128
    %v151 = vpack.c.b16 %v133, %v131
    %v152 = vpack.c.b16 %v134, %v132
    %v153 = vpack.c.b16 %v137, %v135
    %v154 = vpack.c.b16 %v138, %v136
    %171 = vmatprep.subr.bf16.mxu0 %v154
    %172 = vmatpush1.bf16.msra.mxu0 %v153
    %173 = vmatprep.subr.bf16.mxu0 %v152
    %174 = vmatpush1.bf16.msra.mxu0 %v151
    %175 = vmatprep.subr.bf16.mxu0 %v150
    %176 = vmatpush1.bf16.msra.mxu0 %v149
    %177 = vmatprep.subr.bf16.mxu0 %v148
    %178 = vmatpush1.bf16.msra.mxu0 %v147
    %179 = vmatprep.subr.bf16.mxu0 %v146
    %180 = vmatpush1.bf16.msra.mxu0 %v145
    %181 = vmatprep.subr.bf16.mxu0 %v144
    %182 = vmatpush1.bf16.msra.mxu0 %v143
    %183 = vmatprep.subr.bf16.mxu0 %v142
    %184 = vmatpush1.bf16.msra.mxu0 %v141
    %185 = vmatprep.subr.bf16.mxu0 %v140
    %186 = vmatpush1.bf16.msra.mxu0 %v139
    %187 = vmatprep.subr.bf16.mxu0 0
    %188 = vmatpush2.bf16.msra.mxu0 0
    %189 = vmatprep.subr.bf16.mxu0 0
    %190 = vmatpush2.bf16.msra.mxu0 0
    %191 = vmatprep.subr.bf16.mxu0 0
    %192 = vmatpush2.bf16.msra.mxu0 0
    %193 = vmatprep.subr.bf16.mxu0 0
    %194 = vmatpush2.bf16.msra.mxu0 0
    %195 = vmatprep.subr.bf16.mxu0 0
    %196 = vmatpush2.bf16.msra.mxu0 0
    %197 = vmatprep.subr.bf16.mxu0 0
    %198 = vmatpush2.bf16.msra.mxu0 0
    %199 = vmatprep.subr.bf16.mxu0 0
    %200 = vmatpush2.bf16.msra.mxu0 0
    %201 = vmatprep.subr.bf16.mxu0 0
    %202 = vmatpush2.bf16.msra.mxu0 0
    %203 = vmatprep.mubr.bf16.mxu0 0
    %204 = vmatmul.mubr.bf16.gmra.mxu0 %v62
    %v205 = vpop.f32.mrf.mxu0
    %v206 = vadd.f32 %v84, %v205
    %v207 = vpop.f32.mrf.mxu0
    %v208 = vadd.f32 %v88, %v207
    %v209 = vpop.f32.mrf.mxu0
    %v210 = vpop.f32.mrf.mxu0
    %211 = vdwg.mxu0
    %v212 = vmul.f32 %v206, %v206
    %v213 = vmul.f32 %v208, %v208
    %v214 = vmul.f32 %v206, %v212
    %v215 = vmul.f32 %v208, %v213
    %v216 = vmul.f32 %v214, 0.044715
    %v217 = vmul.f32 %v215, 0.044715
    %v218 = vadd.f32 %v206, %v216
    %v219 = vadd.f32 %v208, %v217
    %v220 = vmul.f32 %v218, 0.7978846
    %v221 = vmul.f32 %v219, 0.7978846
    %v222 = vtanh.pop %v220
    %v223 = vtanh.pop %v221
    %v224 = vadd.f32 %v222, 1.0
    %v225 = vadd.f32 %v223, 1.0
    %v226 = vmul.f32 %v224, 0.5
    %v227 = vmul.f32 %v225, 0.5
    %v228 = vmul.f32 %v206, %v226
    %v229 = vmul.f32 %v208, %v227
    %v230 = vpack.c.bf16 %v228, %v228
    %v231 = vpack.c.bf16 %v229, %v229
    %v232 = vld [vmem:[#allocation7] sm:$0xf]
    %v233 = vld [vmem:[#allocation7 + $0x4] sm:$0xf]
    %v234 = vld [vmem:[#allocation7 + $0x8] sm:$0xf]
    %v235 = vld [vmem:[#allocation7 + $0xc] sm:$0xf]
    %v236 = vld [vmem:[#allocation7 + $0x10] sm:$0xf]
    %v237 = vld [vmem:[#allocation7 + $0x14] sm:$0xf]
    %v238 = vld [vmem:[#allocation7 + $0x18] sm:$0xf]
    %v239 = vld [vmem:[#allocation7 + $0x1c] sm:$0xf]
    %v240 = vld [vmem:[#allocation7 + $0x20] sm:$0xf]
    %v241 = vld [vmem:[#allocation7 + $0x24] sm:$0xf]
    %v242 = vld [vmem:[#allocation7 + $0x28] sm:$0xf]
    %v243 = vld [vmem:[#allocation7 + $0x2c] sm:$0xf]
    %v244 = vld [vmem:[#allocation7 + $0x30] sm:$0xf]
    %v245 = vld [vmem:[#allocation7 + $0x34] sm:$0xf]
    %v246 = vld [vmem:[#allocation7 + $0x38] sm:$0xf]
    %v247 = vld [vmem:[#allocation7 + $0x3c] sm:$0xf]
    %v248 = vld [vmem:[#allocation7 + $0x40] sm:$0xf]
    %v249 = vld [vmem:[#allocation7 + $0x44] sm:$0xf]
    %v250 = vld [vmem:[#allocation7 + $0x48] sm:$0xf]
    %v251 = vld [vmem:[#allocation7 + $0x4c] sm:$0xf]
    %v252 = vld [vmem:[#allocation7 + $0x50] sm:$0xf]
    %v253 = vld [vmem:[#allocation7 + $0x54] sm:$0xf]
    %v254 = vld [vmem:[#allocation7 + $0x58] sm:$0xf]
    %v255 = vld [vmem:[#allocation7 + $0x5c] sm:$0xf]
    %v256 = vld [vmem:[#allocation7 + $0x60] sm:$0xf]
    %v257 = vld [vmem:[#allocation7 + $0x64] sm:$0xf]
    %v258 = vld [vmem:[#allocation7 + $0x68] sm:$0xf]
    %v259 = vld [vmem:[#allocation7 + $0x6c] sm:$0xf]
    %v260 = vld [vmem:[#allocation7 + $0x70] sm:$0xf]
    %v261 = vld [vmem:[#allocation7 + $0x74] sm:$0xf]
    %v262 = vld [vmem:[#allocation7 + $0x78] sm:$0xf]
    %v263 = vld [vmem:[#allocation7 + $0x7c] sm:$0xf]
    %v264 = vld [vmem:[%s4] sm:$0x1]
    %v266 = vlaneseq
    %v267 = vshrl.u32 %v266, 7
    %v268 = vsub.s32 0, %v267
    %v269 = vrot.slane %v264, %v268
    %v303 = vunpack.c.l.b16 %v232
    %v304 = vunpack.c.l.b16 %v233
    %v305 = vunpack.c.l.b16 %v234
    %v306 = vunpack.c.l.b16 %v235
    %v307 = vunpack.c.l.b16 %v236
    %v308 = vunpack.c.l.b16 %v237
    %v309 = vunpack.c.l.b16 %v238
    %v310 = vunpack.c.l.b16 %v239
    %v311 = vunpack.c.l.b16 %v240
    %v312 = vunpack.c.l.b16 %v241
    %v313 = vunpack.c.l.b16 %v242
    %v314 = vunpack.c.l.b16 %v243
    %v315 = vunpack.c.l.b16 %v244
    %v316 = vunpack.c.l.b16 %v245
    %v317 = vunpack.c.l.b16 %v246
    %v318 = vunpack.c.l.b16 %v247
    %v319 = vunpack.c.l.b16 %v248
    %v320 = vunpack.c.l.b16 %v249
    %v321 = vunpack.c.l.b16 %v250
    %v322 = vunpack.c.l.b16 %v251
    %v323 = vunpack.c.l.b16 %v252
    %v324 = vunpack.c.l.b16 %v253
    %v325 = vunpack.c.l.b16 %v254
    %v326 = vunpack.c.l.b16 %v255
    %v327 = vunpack.c.l.b16 %v256
    %v328 = vunpack.c.l.b16 %v257
    %v329 = vunpack.c.l.b16 %v258
    %v330 = vunpack.c.l.b16 %v259
    %v331 = vunpack.c.l.b16 %v260
    %v332 = vunpack.c.l.b16 %v261
    %v333 = vunpack.c.l.b16 %v262
    %v334 = vunpack.c.l.b16 %v263
    %v335 = vpack.c.b16 %v304, %v303
    %v336 = vpack.c.b16 %v306, %v305
    %v337 = vpack.c.b16 %v308, %v307
    %v338 = vpack.c.b16 %v310, %v309
    %v339 = vpack.c.b16 %v312, %v311
    %v340 = vpack.c.b16 %v314, %v313
    %v341 = vpack.c.b16 %v316, %v315
    %v342 = vpack.c.b16 %v318, %v317
    %v343 = vpack.c.b16 %v320, %v319
    %v344 = vpack.c.b16 %v322, %v321
    %v345 = vpack.c.b16 %v324, %v323
    %v346 = vpack.c.b16 %v326, %v325
    %v347 = vpack.c.b16 %v328, %v327
    %v348 = vpack.c.b16 %v330, %v329
    %v349 = vpack.c.b16 %v332, %v331
    %v350 = vpack.c.b16 %v334, %v333
    %367 = vmatprep.subr.bf16.mxu0 0
    %368 = vmatpush1.bf16.msra.mxu0 %v342
    %369 = vmatprep.subr.bf16.mxu0 0
    %370 = vmatpush1.bf16.msra.mxu0 %v341
    %371 = vmatprep.subr.bf16.mxu0 0
    %372 = vmatpush1.bf16.msra.mxu0 %v340
    %373 = vmatprep.subr.bf16.mxu0 0
    %374 = vmatpush1.bf16.msra.mxu0 %v339
    %375 = vmatprep.subr.bf16.mxu0 0
    %376 = vmatpush1.bf16.msra.mxu0 %v338
    %377 = vmatprep.subr.bf16.mxu0 0
    %378 = vmatpush1.bf16.msra.mxu0 %v337
    %379 = vmatprep.subr.bf16.mxu0 0
    %380 = vmatpush1.bf16.msra.mxu0 %v336
    %381 = vmatprep.subr.bf16.mxu0 0
    %382 = vmatpush1.bf16.msra.mxu0 %v335
    %383 = vmatprep.subr.bf16.mxu0 0
    %384 = vmatpush2.bf16.msra.mxu0 %v350
    %385 = vmatprep.subr.bf16.mxu0 0
    %386 = vmatpush2.bf16.msra.mxu0 %v349
    %387 = vmatprep.subr.bf16.mxu0 0
    %388 = vmatpush2.bf16.msra.mxu0 %v348
    %389 = vmatprep.subr.bf16.mxu0 0
    %390 = vmatpush2.bf16.msra.mxu0 %v347
    %391 = vmatprep.subr.bf16.mxu0 0
    %392 = vmatpush2.bf16.msra.mxu0 %v346
    %393 = vmatprep.subr.bf16.mxu0 0
    %394 = vmatpush2.bf16.msra.mxu0 %v345
    %395 = vmatprep.subr.bf16.mxu0 0
    %396 = vmatpush2.bf16.msra.mxu0 %v344
    %397 = vmatprep.subr.bf16.mxu0 0
    %398 = vmatpush2.bf16.msra.mxu0 %v343
    %399 = vmatprep.mubr.bf16.mxu0 %v231
    %400 = vmatmul.mubr.bf16.gmra.mxu0 %v230
    %v401 = vpop.f32.mrf.mxu0
    %v402 = vadd.f32 %v269, %v401
    %v403 = vpop.f32.mrf.mxu0
    %v404 = vpop.f32.mrf.mxu0
    %v405 = vpop.f32.mrf.mxu0
    %406 = vdwg.mxu0
    %v407 = vadd.f32 %v61, %v402
    %408 = vst [vmem:[#allocation8] sm:$0xff] %v407
    // Predicated region
    $region34: #{tpu_custom_call.1} parent=1 // pred_check
      _
    $region35: #{tpu_custom_call.1} parent=1 // pred_check_branch
      %410 = sbr.rel (0) target = $region37
    $region36: #{tpu_custom_call.1} parent=1 // pred_region
      %s412 = ssub.s32 128, 128
      %413 = vsyncadd [#allocation4], %s412
      %s415 = sshll.u32 [#allocation8], 4
      %s416 = int_to_ptr.vmem [resolvable:$true] %s415
      %418 = dma.vmem_to_hbm [thread:$0]  %s416, 128, %s5, [#allocation4]
    $region37: #{tpu_custom_call.1} parent=1 // pred_fallthru
      _
    // Predicated region
    $region38: #{tpu_custom_call.1} parent=1 // pred_check
      _
    $region39: #{tpu_custom_call.1} parent=1 // pred_check_branch
      %420 = sbr.rel (0) target = $region41
    $region40: #{tpu_custom_call.1} parent=1 // pred_region
      %421 = dma.done [#allocation4], 128
    $region41: #{tpu_custom_call.1} parent=1 // pred_fallthru
      _
    %422 = vsyncpa [#allocation3], 1
    %423 = vsyncpa [#allocation6], 1
    %424 = vsyncpa [#allocation4], 1

</llo_original>
